<compile_context>
chip_gen: v6e
topology: v6e:2x2x1
jax: 0.10.0
libtpu: 0.0.40
codegen_flags: <defaults>
</compile_context>

<pallas_src>
import functools

import jax
import jax.numpy as jnp
from jax.experimental import pallas as pl
from jax.experimental.pallas import tpu as pltpu


# ----------------------------------------------------------------------------
# Kernels (one feature tile per grid step; batch reduction is intra-tile)
# ----------------------------------------------------------------------------
def _bn_eval_kernel(x_ref, stats_ref, out_ref, new_stats_ref,
                    *, momentum, eps, batch):
    """Eval branch of CustomBatchNorm.forward (the custom logic).

    stats_ref rows: [running_mean, running_var]   (2, TILE_F)
    new_stats_ref rows: [new_running_mean, new_running_var]
    """
    x = x_ref[...].astype(jnp.float32)             # (B, TILE_F)
    stats = stats_ref[...].astype(jnp.float32)     # (2, TILE_F)
    rm = stats[0:1, :]
    rv = stats[1:2, :]

    inv_b = 1.0 / float(batch)
    mean = jnp.sum(x, axis=0, keepdims=True) * inv_b           # torch.mean(x, dim=0)
    diff = x - mean                                            # x dead after this point
    # Two-pass variance (numerically stable); unbiased via Bessel rescale.
    var_biased = jnp.sum(diff * diff, axis=0, keepdims=True) * inv_b
    # TODO(synk): batch == 1 gives NaN in PyTorch (torch.var unbiased); we guard
    # the divisor to avoid a trace-time ZeroDivisionError instead.
    var = var_biased * (float(batch) / float(max(batch - 1, 1)))

    new_rm = rm * (1.0 - momentum) + mean * momentum
    new_rv = rv * (1.0 - momentum) + var * momentum

    inv_std = jax.lax.rsqrt(new_rv + eps)
    # (diff + (mean - new_rm)) == (x - new_rm) but keeps x out of the epilogue.
    out_ref[...] = ((diff + (mean - new_rm)) * inv_std).astype(out_ref.dtype)
    new_stats_ref[...] = jnp.concatenate([new_rm, new_rv], axis=0).astype(new_stats_ref.dtype)


def _bn_train_kernel(x_ref, params_ref, out_ref, new_stats_ref,
                     *, momentum, eps, batch):
    """Train branch: standard nn.BatchNorm1d forward + running-stat update.

    params_ref rows: [gamma, beta, running_mean, running_var]   (4, TILE_F)
    new_stats_ref rows: [new_running_mean, new_running_var]
    """
    x = x_ref[...].astype(jnp.float32)             # (B, TILE_F)
    params = params_ref[...].astype(jnp.float32)   # (4, TILE_F)
    gamma = params[0:1, :]
    beta = params[1:2, :]
    rm = params[2:3, :]
    rv = params[3:4, :]

    inv_b = 1.0 / float(batch)
    mean = jnp.sum(x, axis=0, keepdims=True) * inv_b
    diff = x - mean
    var_biased = jnp.sum(diff * diff, axis=0, keepdims=True) * inv_b
    # Unbiased variance derived exactly from the biased one (single reduction).
    var_unbiased = var_biased * (float(batch) / float(max(batch - 1, 1)))

    inv_std = jax.lax.rsqrt(var_biased + eps)
    out_ref[...] = (diff * (inv_std * gamma) + beta).astype(out_ref.dtype)

    # PyTorch BatchNorm running-stat EMA uses the unbiased variance.
    new_rm = rm * (1.0 - momentum) + mean * momentum
    new_rv = rv * (1.0 - momentum) + var_unbiased * momentum
    new_stats_ref[...] = jnp.concatenate([new_rm, new_rv], axis=0).astype(new_stats_ref.dtype)


# ----------------------------------------------------------------------------
# Generation-aware tiling policy
# ----------------------------------------------------------------------------
def _vmem_capacity_bytes():
    """Physical VMEM per TensorCore; conservative v7x fallback if unqueryable."""
    try:
        return int(pltpu.get_tpu_info().vmem_capacity_bytes)
    except Exception:
        return 64 * 1024 * 1024


def _vmem_limit_bytes():
    # ~3/4 of capacity: 48 MiB on v7x (64 MiB VMEM), 96 MiB on v5e/v6e (128 MiB).
    return int(min((_vmem_capacity_bytes() * 3) // 4, 96 * 1024 * 1024))


def _resident_budget_bytes():
    # Leave headroom under the scoped limit for stat buffers / compiler scratch.
    return int(min(_vmem_limit_bytes() - (8 << 20), 48 << 20))


def _pick_tile_f(batch, num_features, itemsize):
    """Lane-dense (multiple-of-128) feature tile sized to the VMEM budget."""
    if num_features <= 128:
        return num_features
    f_padded = pl.cdiv(num_features, 128) * 128
    # Per feature column: double-buffered io-dtype in+out blocks, plus ~2 live
    # f32 copies (x upcast, diff) of the block being computed, plus stat rows.
    per_col = batch * (2 * 2 * itemsize + 2 * 4) + 8 * 4
    tile = (_resident_budget_bytes() // max(per_col, 1)) // 128 * 128
    tile = max(128, min(int(tile), 32768, f_padded))
    if num_features >= 256:
        # Ensure >= 2 grid steps so the "parallel" axis shards across v7x's 2 TCs.
        tile = min(tile, max((num_features // 2) // 128 * 128, 128))
    return tile


def _make_specs(batch, tile_f, n_stat_in):
    x_spec = pl.BlockSpec((batch, tile_f), lambda j: (0, j))
    stat_in_spec = pl.BlockSpec((n_stat_in, tile_f), lambda j: (0, j))
    stat_out_spec = pl.BlockSpec((2, tile_f), lambda j: (0, j))
    return x_spec, stat_in_spec, stat_out_spec


def _compiler_params():
    return pltpu.CompilerParams(
        dimension_semantics=("parallel",),   # feature tiles are independent
        vmem_limit_bytes=_vmem_limit_bytes(),
    )


def _cost_estimate(batch, feat, itemsize, n_stat_in):
    return pl.CostEstimate(
        flops=int(6 * batch * feat),
        transcendentals=int(feat),
        bytes_accessed=int(2 * batch * feat * itemsize + (n_stat_in + 2) * feat * 4),
    )


# ----------------------------------------------------------------------------
# pallas_call wrappers
# ----------------------------------------------------------------------------
def bn_eval_pallas(x, running_mean, running_var, *, momentum=0.1, eps=1e-7,
                   tile_f=None):
    B, F = x.shape
    itemsize = jnp.dtype(x.dtype).itemsize
    stats = jnp.stack([running_mean.astype(jnp.float32),
                       running_var.astype(jnp.float32)], axis=0)      # (2, F)
    tf = tile_f if tile_f is not None else _pick_tile_f(B, F, itemsize)
    x_spec, stat_in_spec, stat_out_spec = _make_specs(B, tf, 2)
    kernel = functools.partial(_bn_eval_kernel, momentum=momentum, eps=eps, batch=B)
    out, new_stats = pl.pallas_call(
        kernel,
        grid=(pl.cdiv(F, tf),),
        in_specs=[x_spec, stat_in_spec],
        out_specs=(x_spec, stat_out_spec),
        out_shape=(
            jax.ShapeDtypeStruct((B, F), x.dtype),
            jax.ShapeDtypeStruct((2, F), jnp.float32),
        ),
        compiler_params=_compiler_params(),
        cost_estimate=_cost_estimate(B, F, itemsize, 2),
    )(x, stats)
    return out, new_stats[0], new_stats[1]


def bn_train_pallas(x, gamma, beta, running_mean, running_var,
                    *, momentum=0.1, eps=1e-5, tile_f=None):
    B, F = x.shape
    itemsize = jnp.dtype(x.dtype).itemsize
    params = jnp.stack([gamma.astype(jnp.float32),
                        beta.astype(jnp.float32),
                        running_mean.astype(jnp.float32),
                        running_var.astype(jnp.float32)], axis=0)     # (4, F)
    tf = tile_f if tile_f is not None else _pick_tile_f(B, F, itemsize)
    x_spec, stat_in_spec, stat_out_spec = _make_specs(B, tf, 4)
    kernel = functools.partial(_bn_train_kernel, momentum=momentum, eps=eps, batch=B)
    out, new_stats = pl.pallas_call(
        kernel,
        grid=(pl.cdiv(F, tf),),
        in_specs=[x_spec, stat_in_spec],
        out_specs=(x_spec, stat_out_spec),
        out_shape=(
            jax.ShapeDtypeStruct((B, F), x.dtype),
            jax.ShapeDtypeStruct((2, F), jnp.float32),
        ),
        compiler_params=_compiler_params(),
        cost_estimate=_cost_estimate(B, F, itemsize, 4),
    )(x, params)
    return out, new_stats[0], new_stats[1]


# ----------------------------------------------------------------------------
# Python-side stateful glue mirroring the PyTorch module (dim=1 variant)
# ----------------------------------------------------------------------------
class CustomBatchNorm:
    """dim=1 variant (nn.BatchNorm1d), input shape (batch, num_features)."""

    def __init__(self, num_features, momenteum=0.1, eps=1e-7):
        # nn.BatchNorm1d parameters / buffers (deterministic init)
        self.weight = jnp.ones((num_features,), jnp.float32)        # gamma
        self.bias = jnp.zeros((num_features,), jnp.float32)         # beta
        self.bn_running_mean = jnp.zeros((num_features,), jnp.float32)
        self.bn_running_var = jnp.ones((num_features,), jnp.float32)
        self.bn_eps = 1e-5
        self.bn_momentum = 0.1
        # Custom eval buffers
        self.running_mean_eval = jnp.zeros((num_features,), jnp.float32)
        self.running_var_eval = jnp.ones((num_features,), jnp.float32)
        self.eps = eps
        self.momenteum = momenteum
        self.was_training = False
        self.training = True

    def __call__(self, x):
        if self.training:
            out, self.bn_running_mean, self.bn_running_var = bn_train_pallas(
                x, self.weight, self.bias, self.bn_running_mean, self.bn_running_var,
                momentum=self.bn_momentum, eps=self.bn_eps)
            self.was_training = True
            return out
        else:
            if self.was_training:
                self.was_training = False
                self.running_mean_eval = self.bn_running_mean
                self.running_var_eval = self.bn_running_var
            out, self.running_mean_eval, self.running_var_eval = bn_eval_pallas(
                x, self.running_mean_eval, self.running_var_eval,
                momentum=self.momenteum, eps=self.eps)
            return out


# ----------------------------------------------------------------------------
# Pure-JAX references for verification
# ----------------------------------------------------------------------------
def _train_ref(x, gamma, beta, rm, rv, momentum, eps):
    mean = jnp.mean(x, axis=0)
    var_b = jnp.var(x, axis=0)            # biased (used for normalization)
    var_u = jnp.var(x, axis=0, ddof=1)    # unbiased (used for running stats)
    y = (x - mean) / jnp.sqrt(var_b + eps) * gamma + beta
    return y, rm * (1 - momentum) + mean * momentum, rv * (1 - momentum) + var_u * momentum


def _eval_ref(x, rm, rv, momentum, eps):
    mean = jnp.mean(x, axis=0)
    var = jnp.var(x, axis=0, ddof=1)
    new_rm = rm * (1 - momentum) + mean * momentum
    new_rv = rv * (1 - momentum) + var * momentum
    return (x - new_rm) / jnp.sqrt(new_rv + eps), new_rm, new_rv


if __name__ == "__main__":
    key = jax.random.PRNGKey(0)
    B, F = 8, 256
    x_train = jax.random.normal(key, (B, F), dtype=jnp.float32)
    x_eval = jax.random.normal(jax.random.fold_in(key, 1), (B, F), dtype=jnp.float32)

    m = CustomBatchNorm(num_features=F)

    # --- train-mode step (standard BatchNorm1d path) ---
    m.training = True
    y_train = m(x_train)
    jax.block_until_ready(y_train)
    ref_y_tr, ref_rm, ref_rv = _train_ref(
        x_train, jnp.ones((F,)), jnp.zeros((F,)), jnp.zeros((F,)), jnp.ones((F,)),
        m.bn_momentum, m.bn_eps)
    assert jnp.allclose(y_train, ref_y_tr, atol=1e-4, rtol=1e-4)
    assert jnp.allclose(m.bn_running_mean, ref_rm, atol=1e-5, rtol=1e-5)
    assert jnp.allclose(m.bn_running_var, ref_rv, atol=1e-5, rtol=1e-5)

    # --- eval-mode step (custom running-stat path) ---
    m.training = False
    y_eval = m(x_eval)
    jax.block_until_ready(y_eval)
    ref_y_ev, ref_erm, ref_erv = _eval_ref(x_eval, ref_rm, ref_rv, m.momenteum, m.eps)
    assert jnp.allclose(y_eval, ref_y_ev, atol=1e-4, rtol=1e-4)
    assert jnp.allclose(m.running_mean_eval, ref_erm, atol=1e-5, rtol=1e-5)
    assert jnp.allclose(m.running_var_eval, ref_erv, atol=1e-5, rtol=1e-5)

    # --- explicitly exercise the multi-tile (grid > 1) path: TILE_F=128, F=256 ---
    y_ev2, rm2, rv2 = bn_eval_pallas(
        x_eval, ref_rm, ref_rv, momentum=m.momenteum, eps=m.eps, tile_f=128)
    jax.block_until_ready(y_ev2)
    assert jnp.allclose(y_ev2, ref_y_ev, atol=1e-4, rtol=1e-4)
    assert jnp.allclose(rm2, ref_erm, atol=1e-5, rtol=1e-5)
    assert jnp.allclose(rv2, ref_erv, atol=1e-5, rtol=1e-5)

    # --- ragged-F path: F=200 (non-multiple of 128), tile_f=128 -> padded last block ---
    x_rag = jax.random.normal(jax.random.fold_in(key, 2), (B, 200), dtype=jnp.float32)
    y_rag, rm_rag, rv_rag = bn_eval_pallas(
        x_rag, jnp.zeros((200,)), jnp.ones((200,)), momentum=0.1, eps=1e-7, tile_f=128)
    jax.block_until_ready(y_rag)
    ref_y_rag, ref_rm_rag, ref_rv_rag = _eval_ref(
        x_rag, jnp.zeros((200,)), jnp.ones((200,)), 0.1, 1e-7)
    assert jnp.allclose(y_rag, ref_y_rag, atol=1e-4, rtol=1e-4)
    assert jnp.allclose(rm_rag, ref_rm_rag, atol=1e-5, rtol=1e-5)
    assert jnp.allclose(rv_rag, ref_rv_rag, atol=1e-5, rtol=1e-5)

    print("KERNEL_OK")
</pallas_src>

<mosaic_0001>
module attributes {stable_mosaic.version = 11 : i64} {
  func.func @_bn_train_kernel(%arg0: i32, %arg1: memref<8x128xf32, #tpu.memory_space<vmem>>, %arg2: memref<4x128xf32, #tpu.memory_space<vmem>>, %arg3: memref<8x128xf32, #tpu.memory_space<vmem>>, %arg4: memref<2x128xf32, #tpu.memory_space<vmem>>) attributes {dimension_semantics = [#tpu.dimension_semantics<parallel>], iteration_bounds = array<i64: 2>, scalar_prefetch = 0 : i64, scratch_operands = 0 : i64, tpu.core_type = #tpu.core_type<tc>, window_params = [{transform_indices = @transform_0, window_bounds = array<i64: 8, 128>}, {transform_indices = @transform_1, window_bounds = array<i64: 4, 128>}, {transform_indices = @transform_2, window_bounds = array<i64: 8, 128>}, {transform_indices = @transform_3, window_bounds = array<i64: 2, 128>}]} {
    %c0 = arith.constant 0 : index
    %c0_0 = arith.constant 0 : index
    %0 = vector.load %arg1[%c0, %c0_0] : memref<8x128xf32, #tpu.memory_space<vmem>>, vector<8x128xf32>
    %c0_1 = arith.constant 0 : index
    %c0_2 = arith.constant 0 : index
    %1 = vector.load %arg2[%c0_1, %c0_2] : memref<4x128xf32, #tpu.memory_space<vmem>>, vector<4x128xf32>
    %2 = vector.extract_strided_slice %1 {offsets = [0, 0], sizes = [1, 128], strides = [1, 1]} : vector<4x128xf32> to vector<1x128xf32>
    %3 = vector.extract_strided_slice %1 {offsets = [1, 0], sizes = [1, 128], strides = [1, 1]} : vector<4x128xf32> to vector<1x128xf32>
    %4 = vector.extract_strided_slice %1 {offsets = [2, 0], sizes = [1, 128], strides = [1, 1]} : vector<4x128xf32> to vector<1x128xf32>
    %5 = vector.extract_strided_slice %1 {offsets = [3, 0], sizes = [1, 128], strides = [1, 1]} : vector<4x128xf32> to vector<1x128xf32>
    %cst = arith.constant dense<0.000000e+00> : vector<128xf32>
    %6 = vector.multi_reduction <add>, %0, %cst [0] : vector<8x128xf32> to vector<128xf32>
    %7 = vector.shape_cast %6 : vector<128xf32> to vector<1x128xf32>
    %cst_3 = arith.constant 1.250000e-01 : f32
    %8 = vector.broadcast %cst_3 : f32 to vector<1x128xf32>
    %9 = arith.mulf %7, %8 : vector<1x128xf32>
    %10 = vector.broadcast %9 : vector<1x128xf32> to vector<8x128xf32>
    %11 = arith.subf %0, %10 : vector<8x128xf32>
    %12 = arith.mulf %11, %11 : vector<8x128xf32>
    %cst_4 = arith.constant dense<0.000000e+00> : vector<128xf32>
    %13 = vector.multi_reduction <add>, %12, %cst_4 [0] : vector<8x128xf32> to vector<128xf32>
    %14 = vector.shape_cast %13 : vector<128xf32> to vector<1x128xf32>
    %cst_5 = arith.constant 1.250000e-01 : f32
    %15 = vector.broadcast %cst_5 : f32 to vector<1x128xf32>
    %16 = arith.mulf %14, %15 : vector<1x128xf32>
    %cst_6 = arith.constant 1.14285719 : f32
    %17 = vector.broadcast %cst_6 : f32 to vector<1x128xf32>
    %18 = arith.mulf %16, %17 : vector<1x128xf32>
    %cst_7 = arith.constant 9.99999974E-6 : f32
    %19 = vector.broadcast %cst_7 : f32 to vector<1x128xf32>
    %20 = arith.addf %16, %19 : vector<1x128xf32>
    %21 = math.rsqrt %20 : vector<1x128xf32>
    %22 = arith.mulf %21, %2 : vector<1x128xf32>
    %23 = vector.broadcast %22 : vector<1x128xf32> to vector<8x128xf32>
    %24 = arith.mulf %11, %23 : vector<8x128xf32>
    %25 = vector.broadcast %3 : vector<1x128xf32> to vector<8x128xf32>
    %26 = arith.addf %24, %25 : vector<8x128xf32>
    %c0_8 = arith.constant 0 : index
    %c0_9 = arith.constant 0 : index
    %27 = vector.load %arg3[%c0_8, %c0_9] : memref<8x128xf32, #tpu.memory_space<vmem>>, vector<8x128xf32>
    tpu.vector_store %arg3[%c0_8, %c0_9], %26 {strides = array<i32>} : memref<8x128xf32, #tpu.memory_space<vmem>>, vector<8x128xf32>,
    %cst_10 = arith.constant 0.899999976 : f32
    %28 = vector.broadcast %cst_10 : f32 to vector<1x128xf32>
    %29 = arith.mulf %4, %28 : vector<1x128xf32>
    %cst_11 = arith.constant 1.000000e-01 : f32
    %30 = vector.broadcast %cst_11 : f32 to vector<1x128xf32>
    %31 = arith.mulf %9, %30 : vector<1x128xf32>
    %32 = arith.addf %29, %31 : vector<1x128xf32>
    %cst_12 = arith.constant 0.899999976 : f32
    %33 = vector.broadcast %cst_12 : f32 to vector<1x128xf32>
    %34 = arith.mulf %5, %33 : vector<1x128xf32>
    %cst_13 = arith.constant 1.000000e-01 : f32
    %35 = vector.broadcast %cst_13 : f32 to vector<1x128xf32>
    %36 = arith.mulf %18, %35 : vector<1x128xf32>
    %37 = arith.addf %34, %36 : vector<1x128xf32>
    %38 = tpu.concatenate %32, %37 in 0 : vector<1x128xf32>, vector<1x128xf32> -> vector<2x128xf32>
    %c0_14 = arith.constant 0 : index
    %c0_15 = arith.constant 0 : index
    %39 = vector.load %arg4[%c0_14, %c0_15] : memref<2x128xf32, #tpu.memory_space<vmem>>, vector<2x128xf32>
    tpu.vector_store %arg4[%c0_14, %c0_15], %38 {strides = array<i32>} : memref<2x128xf32, #tpu.memory_space<vmem>>, vector<2x128xf32>,
    return
  }
  func.func @transform_0(%arg0: i32) -> (i32, i32) {
    %c0_i32 = arith.constant 0 : i32
    %c0_i32_0 = arith.constant 0 : i32
    return %c0_i32, %arg0 : i32, i32
  }
  func.func @transform_1(%arg0: i32) -> (i32, i32) {
    %c0_i32 = arith.constant 0 : i32
    %c0_i32_0 = arith.constant 0 : i32
    return %c0_i32, %arg0 : i32, i32
  }
  func.func @transform_2(%arg0: i32) -> (i32, i32) {
    %c0_i32 = arith.constant 0 : i32
    %c0_i32_0 = arith.constant 0 : i32
    return %c0_i32, %arg0 : i32, i32
  }
  func.func @transform_3(%arg0: i32) -> (i32, i32) {
    %c0_i32 = arith.constant 0 : i32
    %c0_i32_0 = arith.constant 0 : i32
    return %c0_i32, %arg0 : i32, i32
  }
}

</mosaic_0001>

<llo_original>
// kernel: tpu_custom_call.1
$region0: #{tpu_custom_call.1}
  #allocation0 [shape = 'u32[]', space=smem, size = 0x4, offset = 0x4, fixed_abs, tag = 'smem constant byte address 0x4 - core index']
  #allocation1 [shape = 'u32[144,128]{1,0:T(1,128)}', space=vmem, size = 0x12000, scoped, tag = 'internal scratch']
  %s0 = inlined_call_operand.hbm [shape: f32[8,256], index: 0, kind: input, shape index: {}]
  %s1 = inlined_call_operand.hbm [shape: f32[4,256], index: 1, kind: input, shape index: {}]
  %s2 = inlined_call_operand.hbm [shape: f32[8,256], index: 2, kind: output, shape index: {0}]
  %s3 = inlined_call_operand.hbm [shape: f32[2,256], index: 3, kind: output, shape index: {1}]
  %4 = xla_tuple %s2, %s3
  %s5 = sld [smem:[#allocation0]]
  $region57: #{tpu_custom_call.1} parent=0
    _
  %s7 = ssub.s32 1, %s5
  %s8 = scalar_select 0, %s7, %s5
  $region1: #{tpu_custom_call.1} parent=0
    #allocation2 [shape = 'u8[8192]{0}', space=vmem, size = 0x2000, scoped, tag = 'input window, operand 0']
    #allocation3 [shape = 's32[2]{0}', space=sflag, size = 0x8, scoped, tag = 'scoped memory for tpu_custom_call.1']
    #allocation4 [shape = 's32[2]{0}', space=sflag, size = 0x8, scoped, tag = 'scoped memory for tpu_custom_call.1']
    #allocation5 [shape = 'u8[4096]{0}', space=vmem, size = 0x1000, scoped, tag = 'input window, operand 1']
    #allocation6 [shape = 's32[2]{0}', space=sflag, size = 0x8, scoped, tag = 'scoped memory for tpu_custom_call.1']
    #allocation7 [shape = 'u8[8192]{0}', space=vmem, size = 0x2000, scoped, tag = 'output window, operand 0']
    #allocation8 [shape = 'u8[2048]{0}', space=vmem, size = 0x800, scoped, tag = 'output window, operand 1']
    #allocation9 [shape = 's32[2]{0}', space=sflag, size = 0x8, scoped, tag = 'scoped memory for tpu_custom_call.1']
    %9 = vsyncpa [#allocation3], 0
    %s10 = scalar_lea.sflag [#allocation3], 1
    %11 = vsyncpa %s10, 0
    %12 = vsyncpa [#allocation6], 0
    %s13 = scalar_lea.sflag [#allocation6], 1
    %14 = vsyncpa %s13, 0
    %15 = vsyncpa [#allocation4], 0
    %s16 = scalar_lea.sflag [#allocation4], 1
    %17 = vsyncpa %s16, 0
    %18 = vsyncpa [#allocation9], 0
    %s19 = scalar_lea.sflag [#allocation9], 1
    %20 = vsyncpa %s19, 0
    loop: start=0, step=1, limit=4
    $region2: #{tpu_custom_call.1} parent=1 // loop_pre_header
      _
    $region3: #{tpu_custom_call.1} parent=1 // loop_header
      %s22 = sphi 0, %s26
      %p23 = scmp.ge.s32.totalorder %s22, 4
      %s32 = sphi 0, %s34
      %s35 = sphi 0, %s32
      %s36 = sphi 0, %s35
      %s52 = sphi 0, %s36
      %s58 = sphi 0, %s60
      %s61 = sphi 0, %s58
      %s62 = sphi 0, %s61
      %s78 = sphi 0, %s62
      %s84 = sphi 0, %s86
      %s87 = sphi 0, %s84
      %s88 = sphi 0, %s87
      %s104 = sphi 0, %s88
      %s110 = sphi 0, %s112
      %s113 = sphi 0, %s110
      %s114 = sphi 0, %s113
      %s130 = sphi 0, %s114
    $region4: #{tpu_custom_call.1} parent=1 // loop_header_branch
      %25 = sbr.rel (%p23) target = $region8
    $region5: #{tpu_custom_call.1} parent=1 // loop_body
      %s27 = ssub.s32 %s22, 1
      %s28 = ssub.s32 %s22, 2
      %s29 = sadd.s32 %s22, 1
      %s30 = ssub.s32 %s22, %s29
      %p31 = scmp.eq.s32.totalorder %s30, 0
      %s33 = sadd.s32 %s32, 1
      %s34 = scalar_select %p31, %s32, %s33
      %p37 = pneg %p31
      %p38 = scmp.eq.s32.totalorder %s22, 1
      %p39 = por %p37, %p38
      %p40 = scmp.ne.s32.totalorder %s32, %s35
      %p41 = scmp.eq.s32.totalorder %s22, 0
      %p42 = por %p40, %p41
      %p43 = scmp.ne.s32.totalorder %s32, %s35
      %p44 = scmp.eq.s32.totalorder %s27, 1
      %p45 = por %p43, %p44
      %p46 = scmp.ne.s32.totalorder %s35, %s36
      %p47 = scmp.eq.s32.totalorder %s27, 0
      %p48 = por %p46, %p47
      %p49 = scmp.ne.s32.totalorder %s35, %s36
      %p50 = scmp.eq.s32.totalorder %s28, 1
      %p51 = por %p49, %p50
      %p53 = scmp.ne.s32.totalorder %s36, %s52
      %p54 = scmp.eq.s32.totalorder %s28, 0
      %p55 = por %p53, %p54
      %s56 = ssub.s32 %s22, %s29
      %p57 = scmp.eq.s32.totalorder %s56, 0
      %s59 = sadd.s32 %s58, 1
      %s60 = scalar_select %p57, %s58, %s59
      %p63 = pneg %p57
      %p64 = scmp.eq.s32.totalorder %s22, 1
      %p65 = por %p63, %p64
      %p66 = scmp.ne.s32.totalorder %s58, %s61
      %p67 = scmp.eq.s32.totalorder %s22, 0
      %p68 = por %p66, %p67
      %p69 = scmp.ne.s32.totalorder %s58, %s61
      %p70 = scmp.eq.s32.totalorder %s27, 1
      %p71 = por %p69, %p70
      %p72 = scmp.ne.s32.totalorder %s61, %s62
      %p73 = scmp.eq.s32.totalorder %s27, 0
      %p74 = por %p72, %p73
      %p75 = scmp.ne.s32.totalorder %s61, %s62
      %p76 = scmp.eq.s32.totalorder %s28, 1
      %p77 = por %p75, %p76
      %p79 = scmp.ne.s32.totalorder %s62, %s78
      %p80 = scmp.eq.s32.totalorder %s28, 0
      %p81 = por %p79, %p80
      %s82 = ssub.s32 %s22, %s29
      %p83 = scmp.eq.s32.totalorder %s82, 0
      %s85 = sadd.s32 %s84, 1
      %s86 = scalar_select %p83, %s84, %s85
      %p89 = pneg %p83
      %p90 = scmp.eq.s32.totalorder %s22, 1
      %p91 = por %p89, %p90
      %p92 = scmp.ne.s32.totalorder %s84, %s87
      %p93 = scmp.eq.s32.totalorder %s22, 0
      %p94 = por %p92, %p93
      %p95 = scmp.ne.s32.totalorder %s84, %s87
      %p96 = scmp.eq.s32.totalorder %s27, 1
      %p97 = por %p95, %p96
      %p98 = scmp.ne.s32.totalorder %s87, %s88
      %p99 = scmp.eq.s32.totalorder %s27, 0
      %p100 = por %p98, %p99
      %p101 = scmp.ne.s32.totalorder %s87, %s88
      %p102 = scmp.eq.s32.totalorder %s28, 1
      %p103 = por %p101, %p102
      %p105 = scmp.ne.s32.totalorder %s88, %s104
      %p106 = scmp.eq.s32.totalorder %s28, 0
      %p107 = por %p105, %p106
      %s108 = ssub.s32 %s22, %s29
      %p109 = scmp.eq.s32.totalorder %s108, 0
      %s111 = sadd.s32 %s110, 1
      %s112 = scalar_select %p109, %s110, %s111
      %p115 = pneg %p109
      %p116 = scmp.eq.s32.totalorder %s22, 1
      %p117 = por %p115, %p116
      %p118 = scmp.ne.s32.totalorder %s110, %s113
      %p119 = scmp.eq.s32.totalorder %s22, 0
      %p120 = por %p118, %p119
      %p121 = scmp.ne.s32.totalorder %s110, %s113
      %p122 = scmp.eq.s32.totalorder %s27, 1
      %p123 = por %p121, %p122
      %p124 = scmp.ne.s32.totalorder %s113, %s114
      %p125 = scmp.eq.s32.totalorder %s27, 0
      %p126 = por %p124, %p125
      %p127 = scmp.ne.s32.totalorder %s113, %s114
      %p128 = scmp.eq.s32.totalorder %s28, 1
      %p129 = por %p127, %p128
      %p131 = scmp.ne.s32.totalorder %s114, %s130
      %p132 = scmp.eq.s32.totalorder %s28, 0
      %p133 = por %p131, %p132
      %p134 = scmp.le.s32.totalorder 1, %s22
      %p135 = scmp.lt.s32.totalorder %s22, 3
      %p136 = pnand %p134, %p135
      %p137 = pneg %p136
      // Predicated region
      $region9: #{tpu_custom_call.1} parent=5 // pred_check
        _
      $region10: #{tpu_custom_call.1} parent=5 // pred_check_branch
        %139 = sbr.rel (%p136) target = $region12
      $region11: #{tpu_custom_call.1} parent=5 // pred_region
        %s140 = ssub.s32 %s22, 1
      $region12: #{tpu_custom_call.1} parent=5 // pred_fallthru
        _
      %p141 = scmp.lt.s32.totalorder %s22, 2
      // Predicated region
      $region13: #{tpu_custom_call.1} parent=5 // pred_check
        %p142 = pneg %p141
      $region14: #{tpu_custom_call.1} parent=5 // pred_check_branch
        %144 = sbr.rel (%p142) target = $region16
      $region15: #{tpu_custom_call.1} parent=5 // pred_region
        // Predicated region
        $region17: #{tpu_custom_call.1} parent=15 // pred_check
          %p145 = pneg %p42
        $region18: #{tpu_custom_call.1} parent=15 // pred_check_branch
          %147 = sbr.rel (%p145) target = $region20
        $region19: #{tpu_custom_call.1} parent=15 // pred_region
          %s148 = sand.u32 %s32, 1
          %s149 = scalar_lea.sflag [#allocation3], %s148
          %s150 = sand.u32 %s32, 1
          %s151 = smul.addr %s150, 8
          %s152 = scalar_lea.vmem [#allocation2], %s151
          %s154 = ssub.s32 128, 128
          %155 = vsyncadd %s149, %s154
          %s156 = smul.addr %s22, 128
          %s157 = scalar_lea.hbm %s0, %s156
          %s159 = sshll.u32 %s152, 4
          %s160 = int_to_ptr.vmem [resolvable:$true] %s159
          %162 = dma.hbm_to_vmem [thread:$0]  %s157, 128, %s160, %s149
        $region20: #{tpu_custom_call.1} parent=15 // pred_fallthru
          _
        // Predicated region
        $region21: #{tpu_custom_call.1} parent=15 // pred_check
          %p163 = pneg %p68
        $region22: #{tpu_custom_call.1} parent=15 // pred_check_branch
          %165 = sbr.rel (%p163) target = $region24
        $region23: #{tpu_custom_call.1} parent=15 // pred_region
          %s166 = sand.u32 %s58, 1
          %s167 = scalar_lea.sflag [#allocation6], %s166
          %s168 = sand.u32 %s58, 1
          %s169 = smul.addr %s168, 4
          %s170 = scalar_lea.vmem [#allocation5], %s169
          %s172 = ssub.s32 64, 64
          %173 = vsyncadd %s167, %s172
          %s174 = smul.addr %s22, 64
          %s175 = scalar_lea.hbm %s1, %s174
          %s177 = sshll.u32 %s170, 4
          %s178 = int_to_ptr.vmem [resolvable:$true] %s177
          %180 = dma.hbm_to_vmem [thread:$0]  %s175, 64, %s178, %s167
        $region24: #{tpu_custom_call.1} parent=15 // pred_fallthru
          _
      $region16: #{tpu_custom_call.1} parent=5 // pred_fallthru
        _
      %p181 = scmp.le.s32.totalorder 1, %s22
      %p182 = scmp.lt.s32.totalorder %s22, 3
      %p183 = pnand %p181, %p182
      %p184 = pneg %p183
      // Predicated region
      $region25: #{tpu_custom_call.1} parent=5 // pred_check
        _
      $region26: #{tpu_custom_call.1} parent=5 // pred_check_branch
        %186 = sbr.rel (%p183) target = $region28
      $region27: #{tpu_custom_call.1} parent=5 // pred_region
        %s187 = ssub.s32 %s22, 1
        %s188 = sand.u32 %s35, 1
        %s189 = scalar_lea.sflag [#allocation3], %s188
        %s190 = sand.u32 %s35, 1
        %s191 = smul.addr %s190, 8
        %s192 = scalar_lea.vmem [#allocation2], %s191
        // Predicated region
        $region29: #{tpu_custom_call.1} parent=27 // pred_check
          %p193 = pneg %p48
        $region30: #{tpu_custom_call.1} parent=27 // pred_check_branch
          %195 = sbr.rel (%p193) target = $region32
        $region31: #{tpu_custom_call.1} parent=27 // pred_region
          %196 = dma.done %s189, 128
        $region32: #{tpu_custom_call.1} parent=27 // pred_fallthru
          _
        %s197 = sand.u32 %s61, 1
        %s198 = scalar_lea.sflag [#allocation6], %s197
        %s199 = sand.u32 %s61, 1
        %s200 = smul.addr %s199, 4
        %s201 = scalar_lea.vmem [#allocation5], %s200
        // Predicated region
        $region33: #{tpu_custom_call.1} parent=27 // pred_check
          %p202 = pneg %p74
        $region34: #{tpu_custom_call.1} parent=27 // pred_check_branch
          %204 = sbr.rel (%p202) target = $region36
        $region35: #{tpu_custom_call.1} parent=27 // pred_region
          %205 = dma.done %s198, 64
        $region36: #{tpu_custom_call.1} parent=27 // pred_fallthru
          _
        %s206 = sand.u32 %s35, 1
        %s207 = scalar_lea.sflag [#allocation3], %s206
        %s208 = sand.u32 %s35, 1
        %s209 = smul.addr %s208, 8
        %s210 = scalar_lea.vmem [#allocation2], %s209
        %p211 = pneg %p48
        %p212 = pneg %p45
        %s213 = sand.u32 %s61, 1
        %s214 = scalar_lea.sflag [#allocation6], %s213
        %s215 = sand.u32 %s61, 1
        %s216 = smul.addr %s215, 4
        %s217 = scalar_lea.vmem [#allocation5], %s216
        %p218 = pneg %p74
        %p219 = pneg %p71
        %p220 = pneg %p100
        %p221 = pneg %p97
        %s222 = sand.u32 %s87, 1
        %s223 = scalar_lea.sflag [#allocation4], %s222
        %s224 = sand.u32 %s87, 1
        %s225 = smul.addr %s224, 8
        %s226 = scalar_lea.vmem [#allocation7], %s225
        %p227 = pneg %p126
        %p228 = pneg %p123
        %s229 = sand.u32 %s113, 1
        %s230 = scalar_lea.sflag [#allocation9], %s229
        %s231 = sand.u32 %s113, 1
        %s232 = smul.addr %s231, 2
        %s233 = scalar_lea.vmem [#allocation8], %s232
        %v234 = vld [vmem:[%s192] sm:$0xff]
        %v235 = vld [vmem:[%s201] sm:$0xf]
        %v236 = vrot.slane %v234, 4
        %v237 = vadd.f32 %v234, %v236
        %v238 = vrot.slane %v237, 2
        %v239 = vadd.f32 %v237, %v238
        %v240 = vrot.slane %v239, 1
        %v241 = vadd.f32 %v239, %v240
        %v242 = vmul.f32 %v241, 0.125
        %v243 = vsub.f32 %v234, %v242
        %v244 = vmul.f32 %v243, %v243
        %v245 = vrot.slane %v244, 4
        %v246 = vadd.f32 %v244, %v245
        %v247 = vrot.slane %v246, 2
        %v248 = vadd.f32 %v246, %v247
        %v249 = vrot.slane %v248, 1
        %v250 = vadd.f32 %v248, %v249
        %v251 = vmul.f32 %v250, 0.125
        %v252 = vmul.f32 %v251, 1.1428572
        %v253 = vadd.f32 %v251, 1e-05
        %v254 = vrsqrt.pop %v253
        %v255 = vmul.f32 %v254, %v235
        %v256 = vlaneseq
        %v257 = vshrl.u32 %v256, 7
        %v258 = vsub.s32 0, %v257
        %v259 = vrot.slane %v255, %v258
        %v260 = vmul.f32 %v243, %v259
        %v261 = vlaneseq
        %v262 = vshrl.u32 %v261, 7
        %v263 = vsub.s32 1, %v262
        %v264 = vrot.slane %v235, %v263
        %v265 = vadd.f32 %v260, %v264
        %266 = vst [vmem:[%s226] sm:$0xff] %v265
        %v267 = vmul.f32 %v235, 0.9
        %v268 = vmul.f32 %v242, 0.1
        %v269 = vadd.f32 %v267, %v268
        %v270 = vmul.f32 %v252, 0.1
        %v271 = vadd.f32 %v267, %v270
        %v273 = vrot.slane %v269, 2
        %v276 = vrot.slane %v271, 2
        %vm278 = vcmask 1040384
        %v279 = vsel %vm278, %v273, %v276
        %280 = vst [vmem:[%s233] sm:$0x3] %v279
        %s281 = sand.u32 %s87, 1
        %s282 = scalar_lea.sflag [#allocation4], %s281
        %s283 = sand.u32 %s87, 1
        %s284 = smul.addr %s283, 8
        %s285 = scalar_lea.vmem [#allocation7], %s284
        %s286 = sand.u32 %s113, 1
        %s287 = scalar_lea.sflag [#allocation9], %s286
        %s288 = sand.u32 %s113, 1
        %s289 = smul.addr %s288, 2
        %s290 = scalar_lea.vmem [#allocation8], %s289
        // Predicated region
        $region37: #{tpu_custom_call.1} parent=27 // pred_check
          %p291 = pneg %p97
        $region38: #{tpu_custom_call.1} parent=27 // pred_check_branch
          %293 = sbr.rel (%p291) target = $region40
        $region39: #{tpu_custom_call.1} parent=27 // pred_region
          %s295 = ssub.s32 128, 128
          %296 = vsyncadd %s282, %s295
          %s297 = smul.addr %s27, 128
          %s298 = scalar_lea.hbm %s2, %s297
          %s300 = sshll.u32 %s285, 4
          %s301 = int_to_ptr.vmem [resolvable:$true] %s300
          %303 = dma.vmem_to_hbm [thread:$0]  %s301, 128, %s298, %s282
        $region40: #{tpu_custom_call.1} parent=27 // pred_fallthru
          _
        // Predicated region
        $region41: #{tpu_custom_call.1} parent=27 // pred_check
          %p304 = pneg %p123
        $region42: #{tpu_custom_call.1} parent=27 // pred_check_branch
          %306 = sbr.rel (%p304) target = $region44
        $region43: #{tpu_custom_call.1} parent=27 // pred_region
          %s308 = ssub.s32 32, 32
          %309 = vsyncadd %s287, %s308
          %s310 = smul.addr %s27, 32
          %s311 = scalar_lea.hbm %s3, %s310
          %s313 = sshll.u32 %s290, 4
          %s314 = int_to_ptr.vmem [resolvable:$true] %s313
          %316 = dma.vmem_to_hbm [thread:$0]  %s314, 32, %s311, %s287
        $region44: #{tpu_custom_call.1} parent=27 // pred_fallthru
          _
      $region28: #{tpu_custom_call.1} parent=5 // pred_fallthru
        _
      %p317 = scmp.le.s32.totalorder 2, %s22
      // Predicated region
      $region45: #{tpu_custom_call.1} parent=5 // pred_check
        %p318 = pneg %p317
      $region46: #{tpu_custom_call.1} parent=5 // pred_check_branch
        %320 = sbr.rel (%p318) target = $region48
      $region47: #{tpu_custom_call.1} parent=5 // pred_region
        %s321 = ssub.s32 %s22, 2
        // Predicated region
        $region49: #{tpu_custom_call.1} parent=47 // pred_check
          %p322 = pneg %p103
        $region50: #{tpu_custom_call.1} parent=47 // pred_check_branch
          %324 = sbr.rel (%p322) target = $region52
        $region51: #{tpu_custom_call.1} parent=47 // pred_region
          %s325 = sand.u32 %s88, 1
          %s326 = scalar_lea.sflag [#allocation4], %s325
          %s327 = sand.u32 %s88, 1
          %s328 = smul.addr %s327, 8
          %s329 = scalar_lea.vmem [#allocation7], %s328
          %330 = dma.done %s326, 128
        $region52: #{tpu_custom_call.1} parent=47 // pred_fallthru
          _
        // Predicated region
        $region53: #{tpu_custom_call.1} parent=47 // pred_check
          %p331 = pneg %p129
        $region54: #{tpu_custom_call.1} parent=47 // pred_check_branch
          %333 = sbr.rel (%p331) target = $region56
        $region55: #{tpu_custom_call.1} parent=47 // pred_region
          %s334 = sand.u32 %s114, 1
          %s335 = scalar_lea.sflag [#allocation9], %s334
          %s336 = sand.u32 %s114, 1
          %s337 = smul.addr %s336, 2
          %s338 = scalar_lea.vmem [#allocation8], %s337
          %339 = dma.done %s335, 32
        $region56: #{tpu_custom_call.1} parent=47 // pred_fallthru
          _
      $region48: #{tpu_custom_call.1} parent=5 // pred_fallthru
        _
    $region6: #{tpu_custom_call.1} parent=1 // loop_footer
      %s26 = sadd.s32 1, %s22
    $region7: #{tpu_custom_call.1} parent=1 // loop_footer_branch
      %21 = sbr.rel target = $region3
    $region8: #{tpu_custom_call.1} parent=1 // loop_exit
      _
    %340 = vsyncpa [#allocation3], 1
    %s341 = scalar_lea.sflag [#allocation3], 1
    %342 = vsyncpa %s341, 1
    %343 = vsyncpa [#allocation6], 1
    %s344 = scalar_lea.sflag [#allocation6], 1
    %345 = vsyncpa %s344, 1
    %346 = vsyncpa [#allocation4], 1
    %s347 = scalar_lea.sflag [#allocation4], 1
    %348 = vsyncpa %s347, 1
    %349 = vsyncpa [#allocation9], 1
    %s350 = scalar_lea.sflag [#allocation9], 1
    %351 = vsyncpa %s350, 1

</llo_original>
